<compile_context>
chip_gen: v5e
topology: v5e:2x2
jax: 0.10.0
libtpu: 0.0.40
codegen_flags: <defaults>
</compile_context>

<pallas_src>
import jax
import jax.numpy as jnp
from jax.experimental import pallas as pl
from jax.experimental.pallas import tpu as pltpu

_LANE = 128
_SUBLANE = 8
_LAYERS = ["enc_1", "enc_2", "enc_3", "z", "dec_1", "dec_2", "dec_3", "x_bar"]


def _round_up(x, m):
    return ((x + m - 1) // m) * m


def _ae_kernel(
    x_ref,
    w1_ref, b1_ref,
    w2_ref, b2_ref,
    w3_ref, b3_ref,
    wz_ref, bz_ref,
    w4_ref, b4_ref,
    w5_ref, b5_ref,
    w6_ref, b6_ref,
    w7_ref, b7_ref,
    out_ref,
):
    """Fused 8-layer MLP autoencoder forward for one batch tile.

    Matmuls run in the weights' dtype (bf16 by default) with f32 accumulation;
    bias-add / ReLU stay in f32.  Results are written as one packed,
    lane-dense slab: [x_bar | enc_h1 | enc_h2 | enc_h3 | z] (128-aligned).
    """
    compute_dtype = w1_ref.dtype

    def linear(a, w_ref, b_ref):
        # a: [TM, K] (compute_dtype), w: [K, M] (compute_dtype), b: [1, M] f32
        acc = jnp.dot(a, w_ref[...], preferred_element_type=jnp.float32)
        return acc + b_ref[...]

    def relu(a_f32):
        return jnp.maximum(a_f32, 0.0)

    x = x_ref[...]                                           # already compute_dtype

    h1_f32 = relu(linear(x, w1_ref, b1_ref))
    h1 = h1_f32.astype(compute_dtype)
    h2_f32 = relu(linear(h1, w2_ref, b2_ref))
    h2 = h2_f32.astype(compute_dtype)
    h3_f32 = relu(linear(h2, w3_ref, b3_ref))
    h3 = h3_f32.astype(compute_dtype)
    z_f32 = linear(h3, wz_ref, bz_ref)                       # no ReLU on latent
    z = z_f32.astype(compute_dtype)
    d1 = relu(linear(z, w4_ref, b4_ref)).astype(compute_dtype)
    d2 = relu(linear(d1, w5_ref, b5_ref)).astype(compute_dtype)
    d3 = relu(linear(d2, w6_ref, b6_ref)).astype(compute_dtype)
    xbar_f32 = linear(d3, w7_ref, b7_ref)                    # no ReLU on output

    # Packed, lane-dense output: each segment width is a multiple of 128 and
    # starts at a 128-aligned static offset -> unmasked full-width stores.
    off = 0
    for seg in (xbar_f32, h1_f32, h2_f32, h3_f32, z_f32):
        width = seg.shape[1]
        out_ref[:, off:off + width] = seg.astype(out_ref.dtype)
        off += width


def ae_forward(x, params, *, tile_m=256, use_bf16=True):
    """Run the AE forward pass.

    x: [N, n_input] float32
    params: dict with pre-transposed weights w_* of shape [in, out] and
            biases b_* of shape [1, out] (float32, unpadded).
    Returns (x_bar, enc_h1, enc_h2, enc_h3, z) — same tuple as the PyTorch
    module's forward().
    """
    n, n_input = x.shape
    compute_dtype = jnp.bfloat16 if use_bf16 else jnp.float32
    itemsize = jnp.dtype(compute_dtype).itemsize

    weights = [params[f"w_{k}"] for k in _LAYERS]
    biases = [params[f"b_{k}"] for k in _LAYERS]
    in_dims = [w.shape[0] for w in weights]
    out_dims = [w.shape[1] for w in weights]
    assert in_dims[0] == n_input

    in_pad = [_round_up(d, _LANE) for d in in_dims]
    out_pad = [_round_up(d, _LANE) for d in out_dims]

    # --- pad + cast weights/biases (zero padding is numerically inert). -----
    w_ops, b_ops = [], []
    for w, b, ip, op in zip(weights, biases, in_pad, out_pad):
        wp = jnp.zeros((ip, op), compute_dtype)
        wp = wp.at[: w.shape[0], : w.shape[1]].set(w.astype(compute_dtype))
        bp = jnp.zeros((1, op), jnp.float32)
        bp = bp.at[:, : b.shape[-1]].set(b.reshape(1, -1).astype(jnp.float32))
        w_ops.append(wp)
        b_ops.append(bp)

    # --- pad batch + input features. ----------------------------------------
    tile = min(_round_up(tile_m, _SUBLANE), _round_up(n, _SUBLANE))
    n_padded = _round_up(n, tile)
    n_in_pad = in_pad[0]
    xp = jnp.zeros((n_padded, n_in_pad), compute_dtype)
    xp = xp.at[:n, :n_input].set(x.astype(compute_dtype))

    # --- packed output layout: [x_bar | h1 | h2 | h3 | z], all 128-aligned. --
    seg_widths = (out_pad[7], out_pad[0], out_pad[1], out_pad[2], out_pad[3])
    seg_real = (out_dims[7], out_dims[0], out_dims[1], out_dims[2], out_dims[3])
    total_out = sum(seg_widths)

    # --- specs ---------------------------------------------------------------
    in_specs = [pl.BlockSpec((tile, n_in_pad), lambda i: (i, 0))]
    operands = [xp]
    for wp, bp in zip(w_ops, b_ops):
        # Full array, same block every grid step (weights stay VMEM-resident).
        in_specs.append(pl.BlockSpec(wp.shape, lambda i: (0, 0)))
        in_specs.append(pl.BlockSpec(bp.shape, lambda i: (0, 0)))
        operands.append(wp)
        operands.append(bp)
    out_spec = pl.BlockSpec((tile, total_out), lambda i: (i, 0))
    out_shape = jax.ShapeDtypeStruct((n_padded, total_out), jnp.float32)

    grid = (n_padded // tile,)

    # --- cost estimate + VMEM budget. ----------------------------------------
    flops = 2 * n_padded * sum(ip * op for ip, op in zip(in_pad, out_pad))
    bytes_accessed = (
        xp.size * itemsize
        + sum(w.size * itemsize for w in w_ops)
        + sum(b.size * 4 for b in b_ops)
        + n_padded * total_out * 4
    )
    weight_bytes = sum(w.size * itemsize for w in w_ops) + sum(b.size * 4 for b in b_ops)
    needed = (
        2 * weight_bytes                       # (double-buffered) resident weights
        + 2 * tile * n_in_pad * itemsize       # double-buffered x tile
        + 2 * tile * total_out * 4             # double-buffered output slab
        + tile * sum(out_pad) * 8              # f32 + compute-dtype intermediates
    )
    # Cap at 64 MiB so the same budget is valid on v7x (64 MiB physical VMEM).
    vmem_limit = int(min(64 * 1024 * 1024, max(32 * 1024 * 1024, 2 * needed)))

    grid_spec = pltpu.PrefetchScalarGridSpec(
        num_scalar_prefetch=0,
        grid=grid,
        in_specs=in_specs,
        out_specs=[out_spec],
    )

    packed = pl.pallas_call(
        _ae_kernel,
        out_shape=(out_shape,),
        grid_spec=grid_spec,
        compiler_params=pltpu.CompilerParams(
            dimension_semantics=("parallel",),
            vmem_limit_bytes=vmem_limit,
        ),
        cost_estimate=pl.CostEstimate(
            flops=flops, transcendentals=0, bytes_accessed=bytes_accessed
        ),
    )(*operands)[0]

    # Slice the packed slab back into (x_bar, enc_h1, enc_h2, enc_h3, z).
    outs = []
    off = 0
    for width, real in zip(seg_widths, seg_real):
        outs.append(packed[:n, off:off + real])
        off += width
    return tuple(outs)


def init_ae_params(key, n_enc_1, n_enc_2, n_enc_3, n_dec_1, n_dec_2, n_dec_3,
                   n_input, n_z):
    """Deterministic synthetic parameters (shapes match the PyTorch module).

    Weights are stored as [in_features, out_features] (transpose of
    torch.nn.Linear.weight); biases as [1, out_features].
    """
    dims = [
        ("enc_1", n_input, n_enc_1),
        ("enc_2", n_enc_1, n_enc_2),
        ("enc_3", n_enc_2, n_enc_3),
        ("z", n_enc_3, n_z),
        ("dec_1", n_z, n_dec_1),
        ("dec_2", n_dec_1, n_dec_2),
        ("dec_3", n_dec_2, n_dec_3),
        ("x_bar", n_dec_3, n_input),
    ]
    params = {}
    keys = jax.random.split(key, 2 * len(dims))
    for idx, (name, d_in, d_out) in enumerate(dims):
        bound = 1.0 / jnp.sqrt(jnp.float32(d_in))
        params[f"w_{name}"] = jax.random.uniform(
            keys[2 * idx], (d_in, d_out), jnp.float32, -bound, bound
        )
        params[f"b_{name}"] = jax.random.uniform(
            keys[2 * idx + 1], (1, d_out), jnp.float32, -bound, bound
        )
    return params


def ae_forward_ref(x, params, *, matmul_dtype=jnp.float32):
    """Pure-JAX reference (mirrors the PyTorch forward).

    With matmul_dtype=bfloat16 it mirrors the kernel's numerics (bf16 matmul
    operands, f32 accumulation, f32 bias/ReLU).
    """
    def lin(a, name):
        w = params[f"w_{name}"].astype(matmul_dtype)
        acc = jnp.dot(a.astype(matmul_dtype), w,
                      preferred_element_type=jnp.float32)
        return acc + params[f"b_{name}"].astype(jnp.float32)

    enc_h1 = jax.nn.relu(lin(x, "enc_1"))
    enc_h2 = jax.nn.relu(lin(enc_h1, "enc_2"))
    enc_h3 = jax.nn.relu(lin(enc_h2, "enc_3"))
    z = lin(enc_h3, "z")
    dec_h1 = jax.nn.relu(lin(z, "dec_1"))
    dec_h2 = jax.nn.relu(lin(dec_h1, "dec_2"))
    dec_h3 = jax.nn.relu(lin(dec_h2, "dec_3"))
    x_bar = lin(dec_h3, "x_bar")
    return x_bar, enc_h1, enc_h2, enc_h3, z


if __name__ == "__main__":
    # Small shapes consistent with the module: N samples, n_input features.
    n_input, n_z = 32, 16
    n_enc_1, n_enc_2, n_enc_3 = 64, 32, 64
    n_dec_1, n_dec_2, n_dec_3 = 64, 32, 64
    batch = 16

    key = jax.random.PRNGKey(0)
    k_x, k_p = jax.random.split(key)
    x = jax.random.normal(k_x, (batch, n_input), jnp.float32)
    params = init_ae_params(
        k_p, n_enc_1, n_enc_2, n_enc_3, n_dec_1, n_dec_2, n_dec_3, n_input, n_z
    )

    outs = ae_forward(x, params)            # tile_m=256 default, bf16 matmuls
    outs = jax.block_until_ready(outs)

    ref_bf16 = ae_forward_ref(x, params, matmul_dtype=jnp.bfloat16)
    ref_f32 = ae_forward_ref(x, params, matmul_dtype=jnp.float32)
    names = ["x_bar", "enc_h1", "enc_h2", "enc_h3", "z"]
    for name, o, rb, rf in zip(names, outs, ref_bf16, ref_f32):
        assert o.shape == rf.shape, f"shape mismatch for {name}"
        if not jnp.allclose(o, rb, atol=1e-2, rtol=1e-2):
            raise AssertionError(f"Pallas kernel mismatch vs bf16 reference: {name}")
        if not jnp.allclose(o, rf, atol=1e-1, rtol=1e-1):
            raise AssertionError(f"Pallas kernel mismatch vs f32 reference: {name}")

    print("KERNEL_OK")
</pallas_src>

<mosaic_0001>
module attributes {stable_mosaic.version = 11 : i64} {
  func.func @_ae_kernel(%arg0: i32, %arg1: memref<16x128xbf16, #tpu.memory_space<vmem>>, %arg2: memref<128x128xbf16, #tpu.memory_space<vmem>>, %arg3: memref<1x128xf32, #tpu.memory_space<vmem>>, %arg4: memref<128x128xbf16, #tpu.memory_space<vmem>>, %arg5: memref<1x128xf32, #tpu.memory_space<vmem>>, %arg6: memref<128x128xbf16, #tpu.memory_space<vmem>>, %arg7: memref<1x128xf32, #tpu.memory_space<vmem>>, %arg8: memref<128x128xbf16, #tpu.memory_space<vmem>>, %arg9: memref<1x128xf32, #tpu.memory_space<vmem>>, %arg10: memref<128x128xbf16, #tpu.memory_space<vmem>>, %arg11: memref<1x128xf32, #tpu.memory_space<vmem>>, %arg12: memref<128x128xbf16, #tpu.memory_space<vmem>>, %arg13: memref<1x128xf32, #tpu.memory_space<vmem>>, %arg14: memref<128x128xbf16, #tpu.memory_space<vmem>>, %arg15: memref<1x128xf32, #tpu.memory_space<vmem>>, %arg16: memref<128x128xbf16, #tpu.memory_space<vmem>>, %arg17: memref<1x128xf32, #tpu.memory_space<vmem>>, %arg18: memref<16x640xf32, #tpu.memory_space<vmem>>) attributes {dimension_semantics = [#tpu.dimension_semantics<parallel>], iteration_bounds = array<i64: 1>, scalar_prefetch = 0 : i64, scratch_operands = 0 : i64, tpu.core_type = #tpu.core_type<tc>, window_params = [{transform_indices = @transform_0, window_bounds = array<i64: 16, 128>}, {pipeline_mode = #tpu.pipeline_mode<synchronous>, transform_indices = @transform_1, window_bounds = array<i64: 128, 128>}, {pipeline_mode = #tpu.pipeline_mode<synchronous>, transform_indices = @transform_2, window_bounds = array<i64: 1, 128>}, {pipeline_mode = #tpu.pipeline_mode<synchronous>, transform_indices = @transform_3, window_bounds = array<i64: 128, 128>}, {pipeline_mode = #tpu.pipeline_mode<synchronous>, transform_indices = @transform_4, window_bounds = array<i64: 1, 128>}, {pipeline_mode = #tpu.pipeline_mode<synchronous>, transform_indices = @transform_5, window_bounds = array<i64: 128, 128>}, {pipeline_mode = #tpu.pipeline_mode<synchronous>, transform_indices = @transform_6, window_bounds = array<i64: 1, 128>}, {pipeline_mode = #tpu.pipeline_mode<synchronous>, transform_indices = @transform_7, window_bounds = array<i64: 128, 128>}, {pipeline_mode = #tpu.pipeline_mode<synchronous>, transform_indices = @transform_8, window_bounds = array<i64: 1, 128>}, {pipeline_mode = #tpu.pipeline_mode<synchronous>, transform_indices = @transform_9, window_bounds = array<i64: 128, 128>}, {pipeline_mode = #tpu.pipeline_mode<synchronous>, transform_indices = @transform_10, window_bounds = array<i64: 1, 128>}, {pipeline_mode = #tpu.pipeline_mode<synchronous>, transform_indices = @transform_11, window_bounds = array<i64: 128, 128>}, {pipeline_mode = #tpu.pipeline_mode<synchronous>, transform_indices = @transform_12, window_bounds = array<i64: 1, 128>}, {pipeline_mode = #tpu.pipeline_mode<synchronous>, transform_indices = @transform_13, window_bounds = array<i64: 128, 128>}, {pipeline_mode = #tpu.pipeline_mode<synchronous>, transform_indices = @transform_14, window_bounds = array<i64: 1, 128>}, {pipeline_mode = #tpu.pipeline_mode<synchronous>, transform_indices = @transform_15, window_bounds = array<i64: 128, 128>}, {pipeline_mode = #tpu.pipeline_mode<synchronous>, transform_indices = @transform_16, window_bounds = array<i64: 1, 128>}, {transform_indices = @transform_17, window_bounds = array<i64: 16, 640>}]} {
    %c0 = arith.constant 0 : index
    %c0_0 = arith.constant 0 : index
    %0 = vector.load %arg1[%c0, %c0_0] : memref<16x128xbf16, #tpu.memory_space<vmem>>, vector<16x128xbf16>
    %c0_1 = arith.constant 0 : index
    %c0_2 = arith.constant 0 : index
    %1 = vector.load %arg2[%c0_1, %c0_2] : memref<128x128xbf16, #tpu.memory_space<vmem>>, vector<128x128xbf16>
    %cst = arith.constant dense<0.000000e+00> : vector<16x128xf32>
    %2 = tpu.matmul %0, %1, %cst {dimension_numbers = #tpu.dot_dimension_numbers<[1], [0], [0], [1], [0, 0, 1, 1], [], []>} : vector<16x128xbf16>, vector<128x128xbf16>, vector<16x128xf32> -> vector<16x128xf32>
    %c0_3 = arith.constant 0 : index
    %c0_4 = arith.constant 0 : index
    %3 = vector.load %arg3[%c0_3, %c0_4] : memref<1x128xf32, #tpu.memory_space<vmem>>, vector<1x128xf32>
    %4 = vector.broadcast %3 : vector<1x128xf32> to vector<16x128xf32>
    %5 = arith.addf %2, %4 : vector<16x128xf32>
    %cst_5 = arith.constant 0.000000e+00 : f32
    %6 = vector.broadcast %cst_5 : f32 to vector<16x128xf32>
    %7 = arith.maximumf %5, %6 : vector<16x128xf32>
    %8 = arith.truncf %7 : vector<16x128xf32> to vector<16x128xbf16>
    %c0_6 = arith.constant 0 : index
    %c0_7 = arith.constant 0 : index
    %9 = vector.load %arg4[%c0_6, %c0_7] : memref<128x128xbf16, #tpu.memory_space<vmem>>, vector<128x128xbf16>
    %cst_8 = arith.constant dense<0.000000e+00> : vector<16x128xf32>
    %10 = tpu.matmul %8, %9, %cst_8 {dimension_numbers = #tpu.dot_dimension_numbers<[1], [0], [0], [1], [0, 0, 1, 1], [], []>} : vector<16x128xbf16>, vector<128x128xbf16>, vector<16x128xf32> -> vector<16x128xf32>
    %c0_9 = arith.constant 0 : index
    %c0_10 = arith.constant 0 : index
    %11 = vector.load %arg5[%c0_9, %c0_10] : memref<1x128xf32, #tpu.memory_space<vmem>>, vector<1x128xf32>
    %12 = vector.broadcast %11 : vector<1x128xf32> to vector<16x128xf32>
    %13 = arith.addf %10, %12 : vector<16x128xf32>
    %cst_11 = arith.constant 0.000000e+00 : f32
    %14 = vector.broadcast %cst_11 : f32 to vector<16x128xf32>
    %15 = arith.maximumf %13, %14 : vector<16x128xf32>
    %16 = arith.truncf %15 : vector<16x128xf32> to vector<16x128xbf16>
    %c0_12 = arith.constant 0 : index
    %c0_13 = arith.constant 0 : index
    %17 = vector.load %arg6[%c0_12, %c0_13] : memref<128x128xbf16, #tpu.memory_space<vmem>>, vector<128x128xbf16>
    %cst_14 = arith.constant dense<0.000000e+00> : vector<16x128xf32>
    %18 = tpu.matmul %16, %17, %cst_14 {dimension_numbers = #tpu.dot_dimension_numbers<[1], [0], [0], [1], [0, 0, 1, 1], [], []>} : vector<16x128xbf16>, vector<128x128xbf16>, vector<16x128xf32> -> vector<16x128xf32>
    %c0_15 = arith.constant 0 : index
    %c0_16 = arith.constant 0 : index
    %19 = vector.load %arg7[%c0_15, %c0_16] : memref<1x128xf32, #tpu.memory_space<vmem>>, vector<1x128xf32>
    %20 = vector.broadcast %19 : vector<1x128xf32> to vector<16x128xf32>
    %21 = arith.addf %18, %20 : vector<16x128xf32>
    %cst_17 = arith.constant 0.000000e+00 : f32
    %22 = vector.broadcast %cst_17 : f32 to vector<16x128xf32>
    %23 = arith.maximumf %21, %22 : vector<16x128xf32>
    %24 = arith.truncf %23 : vector<16x128xf32> to vector<16x128xbf16>
    %c0_18 = arith.constant 0 : index
    %c0_19 = arith.constant 0 : index
    %25 = vector.load %arg8[%c0_18, %c0_19] : memref<128x128xbf16, #tpu.memory_space<vmem>>, vector<128x128xbf16>
    %cst_20 = arith.constant dense<0.000000e+00> : vector<16x128xf32>
    %26 = tpu.matmul %24, %25, %cst_20 {dimension_numbers = #tpu.dot_dimension_numbers<[1], [0], [0], [1], [0, 0, 1, 1], [], []>} : vector<16x128xbf16>, vector<128x128xbf16>, vector<16x128xf32> -> vector<16x128xf32>
    %c0_21 = arith.constant 0 : index
    %c0_22 = arith.constant 0 : index
    %27 = vector.load %arg9[%c0_21, %c0_22] : memref<1x128xf32, #tpu.memory_space<vmem>>, vector<1x128xf32>
    %28 = vector.broadcast %27 : vector<1x128xf32> to vector<16x128xf32>
    %29 = arith.addf %26, %28 : vector<16x128xf32>
    %30 = arith.truncf %29 : vector<16x128xf32> to vector<16x128xbf16>
    %c0_23 = arith.constant 0 : index
    %c0_24 = arith.constant 0 : index
    %31 = vector.load %arg10[%c0_23, %c0_24] : memref<128x128xbf16, #tpu.memory_space<vmem>>, vector<128x128xbf16>
    %cst_25 = arith.constant dense<0.000000e+00> : vector<16x128xf32>
    %32 = tpu.matmul %30, %31, %cst_25 {dimension_numbers = #tpu.dot_dimension_numbers<[1], [0], [0], [1], [0, 0, 1, 1], [], []>} : vector<16x128xbf16>, vector<128x128xbf16>, vector<16x128xf32> -> vector<16x128xf32>
    %c0_26 = arith.constant 0 : index
    %c0_27 = arith.constant 0 : index
    %33 = vector.load %arg11[%c0_26, %c0_27] : memref<1x128xf32, #tpu.memory_space<vmem>>, vector<1x128xf32>
    %34 = vector.broadcast %33 : vector<1x128xf32> to vector<16x128xf32>
    %35 = arith.addf %32, %34 : vector<16x128xf32>
    %cst_28 = arith.constant 0.000000e+00 : f32
    %36 = vector.broadcast %cst_28 : f32 to vector<16x128xf32>
    %37 = arith.maximumf %35, %36 : vector<16x128xf32>
    %38 = arith.truncf %37 : vector<16x128xf32> to vector<16x128xbf16>
    %c0_29 = arith.constant 0 : index
    %c0_30 = arith.constant 0 : index
    %39 = vector.load %arg12[%c0_29, %c0_30] : memref<128x128xbf16, #tpu.memory_space<vmem>>, vector<128x128xbf16>
    %cst_31 = arith.constant dense<0.000000e+00> : vector<16x128xf32>
    %40 = tpu.matmul %38, %39, %cst_31 {dimension_numbers = #tpu.dot_dimension_numbers<[1], [0], [0], [1], [0, 0, 1, 1], [], []>} : vector<16x128xbf16>, vector<128x128xbf16>, vector<16x128xf32> -> vector<16x128xf32>
    %c0_32 = arith.constant 0 : index
    %c0_33 = arith.constant 0 : index
    %41 = vector.load %arg13[%c0_32, %c0_33] : memref<1x128xf32, #tpu.memory_space<vmem>>, vector<1x128xf32>
    %42 = vector.broadcast %41 : vector<1x128xf32> to vector<16x128xf32>
    %43 = arith.addf %40, %42 : vector<16x128xf32>
    %cst_34 = arith.constant 0.000000e+00 : f32
    %44 = vector.broadcast %cst_34 : f32 to vector<16x128xf32>
    %45 = arith.maximumf %43, %44 : vector<16x128xf32>
    %46 = arith.truncf %45 : vector<16x128xf32> to vector<16x128xbf16>
    %c0_35 = arith.constant 0 : index
    %c0_36 = arith.constant 0 : index
    %47 = vector.load %arg14[%c0_35, %c0_36] : memref<128x128xbf16, #tpu.memory_space<vmem>>, vector<128x128xbf16>
    %cst_37 = arith.constant dense<0.000000e+00> : vector<16x128xf32>
    %48 = tpu.matmul %46, %47, %cst_37 {dimension_numbers = #tpu.dot_dimension_numbers<[1], [0], [0], [1], [0, 0, 1, 1], [], []>} : vector<16x128xbf16>, vector<128x128xbf16>, vector<16x128xf32> -> vector<16x128xf32>
    %c0_38 = arith.constant 0 : index
    %c0_39 = arith.constant 0 : index
    %49 = vector.load %arg15[%c0_38, %c0_39] : memref<1x128xf32, #tpu.memory_space<vmem>>, vector<1x128xf32>
    %50 = vector.broadcast %49 : vector<1x128xf32> to vector<16x128xf32>
    %51 = arith.addf %48, %50 : vector<16x128xf32>
    %cst_40 = arith.constant 0.000000e+00 : f32
    %52 = vector.broadcast %cst_40 : f32 to vector<16x128xf32>
    %53 = arith.maximumf %51, %52 : vector<16x128xf32>
    %54 = arith.truncf %53 : vector<16x128xf32> to vector<16x128xbf16>
    %c0_41 = arith.constant 0 : index
    %c0_42 = arith.constant 0 : index
    %55 = vector.load %arg16[%c0_41, %c0_42] : memref<128x128xbf16, #tpu.memory_space<vmem>>, vector<128x128xbf16>
    %cst_43 = arith.constant dense<0.000000e+00> : vector<16x128xf32>
    %56 = tpu.matmul %54, %55, %cst_43 {dimension_numbers = #tpu.dot_dimension_numbers<[1], [0], [0], [1], [0, 0, 1, 1], [], []>} : vector<16x128xbf16>, vector<128x128xbf16>, vector<16x128xf32> -> vector<16x128xf32>
    %c0_44 = arith.constant 0 : index
    %c0_45 = arith.constant 0 : index
    %57 = vector.load %arg17[%c0_44, %c0_45] : memref<1x128xf32, #tpu.memory_space<vmem>>, vector<1x128xf32>
    %58 = vector.broadcast %57 : vector<1x128xf32> to vector<16x128xf32>
    %59 = arith.addf %56, %58 : vector<16x128xf32>
    %c0_46 = arith.constant 0 : index
    %c0_47 = arith.constant 0 : index
    %60 = vector.load %arg18[%c0_46, %c0_47] : memref<16x640xf32, #tpu.memory_space<vmem>>, vector<16x128xf32>
    tpu.vector_store %arg18[%c0_46, %c0_47], %59 {strides = array<i32>} : memref<16x640xf32, #tpu.memory_space<vmem>>, vector<16x128xf32>,
    %c0_48 = arith.constant 0 : index
    %c128 = arith.constant 128 : index
    %61 = vector.load %arg18[%c0_48, %c128] : memref<16x640xf32, #tpu.memory_space<vmem>>, vector<16x128xf32>
    tpu.vector_store %arg18[%c0_48, %c128], %7 {strides = array<i32>} : memref<16x640xf32, #tpu.memory_space<vmem>>, vector<16x128xf32>,
    %c0_49 = arith.constant 0 : index
    %c256 = arith.constant 256 : index
    %62 = vector.load %arg18[%c0_49, %c256] : memref<16x640xf32, #tpu.memory_space<vmem>>, vector<16x128xf32>
    tpu.vector_store %arg18[%c0_49, %c256], %15 {strides = array<i32>} : memref<16x640xf32, #tpu.memory_space<vmem>>, vector<16x128xf32>,
    %c0_50 = arith.constant 0 : index
    %c384 = arith.constant 384 : index
    %63 = vector.load %arg18[%c0_50, %c384] : memref<16x640xf32, #tpu.memory_space<vmem>>, vector<16x128xf32>
    tpu.vector_store %arg18[%c0_50, %c384], %23 {strides = array<i32>} : memref<16x640xf32, #tpu.memory_space<vmem>>, vector<16x128xf32>,
    %c0_51 = arith.constant 0 : index
    %c512 = arith.constant 512 : index
    %64 = vector.load %arg18[%c0_51, %c512] : memref<16x640xf32, #tpu.memory_space<vmem>>, vector<16x128xf32>
    tpu.vector_store %arg18[%c0_51, %c512], %29 {strides = array<i32>} : memref<16x640xf32, #tpu.memory_space<vmem>>, vector<16x128xf32>,
    return
  }
  func.func @transform_0(%arg0: i32) -> (i32, i32) {
    %c0_i32 = arith.constant 0 : i32
    %c0_i32_0 = arith.constant 0 : i32
    return %arg0, %c0_i32 : i32, i32
  }
  func.func @transform_1(%arg0: i32) -> (i32, i32) {
    %c0_i32 = arith.constant 0 : i32
    %c0_i32_0 = arith.constant 0 : i32
    %c0_i32_1 = arith.constant 0 : i32
    return %c0_i32, %c0_i32_0 : i32, i32
  }
  func.func @transform_2(%arg0: i32) -> (i32, i32) {
    %c0_i32 = arith.constant 0 : i32
    %c0_i32_0 = arith.constant 0 : i32
    %c0_i32_1 = arith.constant 0 : i32
    return %c0_i32, %c0_i32_0 : i32, i32
  }
  func.func @transform_3(%arg0: i32) -> (i32, i32) {
    %c0_i32 = arith.constant 0 : i32
    %c0_i32_0 = arith.constant 0 : i32
    %c0_i32_1 = arith.constant 0 : i32
    return %c0_i32, %c0_i32_0 : i32, i32
  }
  func.func @transform_4(%arg0: i32) -> (i32, i32) {
    %c0_i32 = arith.constant 0 : i32
    %c0_i32_0 = arith.constant 0 : i32
    %c0_i32_1 = arith.constant 0 : i32
    return %c0_i32, %c0_i32_0 : i32, i32
  }
  func.func @transform_5(%arg0: i32) -> (i32, i32) {
    %c0_i32 = arith.constant 0 : i32
    %c0_i32_0 = arith.constant 0 : i32
    %c0_i32_1 = arith.constant 0 : i32
    return %c0_i32, %c0_i32_0 : i32, i32
  }
  func.func @transform_6(%arg0: i32) -> (i32, i32) {
    %c0_i32 = arith.constant 0 : i32
    %c0_i32_0 = arith.constant 0 : i32
    %c0_i32_1 = arith.constant 0 : i32
    return %c0_i32, %c0_i32_0 : i32, i32
  }
  func.func @transform_7(%arg0: i32) -> (i32, i32) {
    %c0_i32 = arith.constant 0 : i32
    %c0_i32_0 = arith.constant 0 : i32
    %c0_i32_1 = arith.constant 0 : i32
    return %c0_i32, %c0_i32_0 : i32, i32
  }
  func.func @transform_8(%arg0: i32) -> (i32, i32) {
    %c0_i32 = arith.constant 0 : i32
    %c0_i32_0 = arith.constant 0 : i32
    %c0_i32_1 = arith.constant 0 : i32
    return %c0_i32, %c0_i32_0 : i32, i32
  }
  func.func @transform_9(%arg0: i32) -> (i32, i32) {
    %c0_i32 = arith.constant 0 : i32
    %c0_i32_0 = arith.constant 0 : i32
    %c0_i32_1 = arith.constant 0 : i32
    return %c0_i32, %c0_i32_0 : i32, i32
  }
  func.func @transform_10(%arg0: i32) -> (i32, i32) {
    %c0_i32 = arith.constant 0 : i32
    %c0_i32_0 = arith.constant 0 : i32
    %c0_i32_1 = arith.constant 0 : i32
    return %c0_i32, %c0_i32_0 : i32, i32
  }
  func.func @transform_11(%arg0: i32) -> (i32, i32) {
    %c0_i32 = arith.constant 0 : i32
    %c0_i32_0 = arith.constant 0 : i32
    %c0_i32_1 = arith.constant 0 : i32
    return %c0_i32, %c0_i32_0 : i32, i32
  }
  func.func @transform_12(%arg0: i32) -> (i32, i32) {
    %c0_i32 = arith.constant 0 : i32
    %c0_i32_0 = arith.constant 0 : i32
    %c0_i32_1 = arith.constant 0 : i32
    return %c0_i32, %c0_i32_0 : i32, i32
  }
  func.func @transform_13(%arg0: i32) -> (i32, i32) {
    %c0_i32 = arith.constant 0 : i32
    %c0_i32_0 = arith.constant 0 : i32
    %c0_i32_1 = arith.constant 0 : i32
    return %c0_i32, %c0_i32_0 : i32, i32
  }
  func.func @transform_14(%arg0: i32) -> (i32, i32) {
    %c0_i32 = arith.constant 0 : i32
    %c0_i32_0 = arith.constant 0 : i32
    %c0_i32_1 = arith.constant 0 : i32
    return %c0_i32, %c0_i32_0 : i32, i32
  }
  func.func @transform_15(%arg0: i32) -> (i32, i32) {
    %c0_i32 = arith.constant 0 : i32
    %c0_i32_0 = arith.constant 0 : i32
    %c0_i32_1 = arith.constant 0 : i32
    return %c0_i32, %c0_i32_0 : i32, i32
  }
  func.func @transform_16(%arg0: i32) -> (i32, i32) {
    %c0_i32 = arith.constant 0 : i32
    %c0_i32_0 = arith.constant 0 : i32
    %c0_i32_1 = arith.constant 0 : i32
    return %c0_i32, %c0_i32_0 : i32, i32
  }
  func.func @transform_17(%arg0: i32) -> (i32, i32) {
    %c0_i32 = arith.constant 0 : i32
    %c0_i32_0 = arith.constant 0 : i32
    return %arg0, %c0_i32 : i32, i32
  }
}

</mosaic_0001>

<llo_original>
// kernel: tpu_custom_call.1
$region0: #{tpu_custom_call.1}
  #allocation0 [shape = 'u32[]', space=smem, size = 0x4, offset = 0x4, fixed_abs, tag = 'smem constant byte address 0x4 - core index']
  #allocation1 [shape = 'u32[72,128]{1,0:T(1,128)}', space=vmem, size = 0x9000, scoped, tag = 'internal scratch']
  %s0 = inlined_call_operand.hbm [shape: bf16[16,128], index: 0, kind: input, shape index: {}]
  %s1 = inlined_call_operand.hbm [shape: bf16[128,128], index: 1, kind: input, shape index: {}]
  %s2 = inlined_call_operand.vmem [shape: f32[1,128], index: 2, kind: input, shape index: {}]
  %s3 = inlined_call_operand.hbm [shape: bf16[128,128], index: 3, kind: input, shape index: {}]
  %s4 = inlined_call_operand.vmem [shape: f32[1,128], index: 4, kind: input, shape index: {}]
  %s5 = inlined_call_operand.hbm [shape: bf16[128,128], index: 5, kind: input, shape index: {}]
  %s6 = inlined_call_operand.vmem [shape: f32[1,128], index: 6, kind: input, shape index: {}]
  %s7 = inlined_call_operand.hbm [shape: bf16[128,128], index: 7, kind: input, shape index: {}]
  %s8 = inlined_call_operand.vmem [shape: f32[1,128], index: 8, kind: input, shape index: {}]
  %s9 = inlined_call_operand.hbm [shape: bf16[128,128], index: 9, kind: input, shape index: {}]
  %s10 = inlined_call_operand.vmem [shape: f32[1,128], index: 10, kind: input, shape index: {}]
  %s11 = inlined_call_operand.hbm [shape: bf16[128,128], index: 11, kind: input, shape index: {}]
  %s12 = inlined_call_operand.vmem [shape: f32[1,128], index: 12, kind: input, shape index: {}]
  %s13 = inlined_call_operand.hbm [shape: bf16[128,128], index: 13, kind: input, shape index: {}]
  %s14 = inlined_call_operand.vmem [shape: f32[1,128], index: 14, kind: input, shape index: {}]
  %s15 = inlined_call_operand.hbm [shape: bf16[128,128], index: 15, kind: input, shape index: {}]
  %s16 = inlined_call_operand.vmem [shape: f32[1,128], index: 16, kind: input, shape index: {}]
  %s17 = inlined_call_operand.hbm [shape: f32[16,640], index: 17, kind: output, shape index: {}]
  %s18 = sld [smem:[#allocation0]]
  $region114: #{tpu_custom_call.1} parent=0
    _
  %s20 = ssub.s32 1, %s18
  %s21 = scalar_select 0, %s20, %s18
  $region1: #{tpu_custom_call.1} parent=0
    #allocation2 [shape = 'u8[4096]{0}', space=vmem, size = 0x1000, scoped, tag = 'input window, operand 0, single buffered']
    #allocation3 [shape = 's32[1]{0}', space=sflag, size = 0x4, scoped, tag = 'scoped memory for tpu_custom_call.1']
    #allocation4 [shape = 's32[1]{0}', space=sflag, size = 0x4, scoped, tag = 'scoped memory for tpu_custom_call.1']
    #allocation5 [shape = 'u8[32768]{0}', space=vmem, size = 0x8000, scoped, tag = 'input window, operand 1, single buffered']
    #allocation6 [shape = 's32[1]{0}', space=sflag, size = 0x4, scoped, tag = 'scoped memory for tpu_custom_call.1']
    #allocation7 [shape = 'u8[32768]{0}', space=vmem, size = 0x8000, scoped, tag = 'input window, operand 3, single buffered']
    #allocation8 [shape = 'u8[32768]{0}', space=vmem, size = 0x8000, scoped, tag = 'input window, operand 5, single buffered']
    #allocation9 [shape = 's32[1]{0}', space=sflag, size = 0x4, scoped, tag = 'scoped memory for tpu_custom_call.1']
    #allocation10 [shape = 'u8[32768]{0}', space=vmem, size = 0x8000, scoped, tag = 'input window, operand 7, single buffered']
    #allocation11 [shape = 'u8[32768]{0}', space=vmem, size = 0x8000, scoped, tag = 'input window, operand 9, single buffered']
    #allocation12 [shape = 's32[1]{0}', space=sflag, size = 0x4, scoped, tag = 'scoped memory for tpu_custom_call.1']
    #allocation13 [shape = 'u8[32768]{0}', space=vmem, size = 0x8000, scoped, tag = 'input window, operand 11, single buffered']
    #allocation14 [shape = 'u8[32768]{0}', space=vmem, size = 0x8000, scoped, tag = 'input window, operand 13, single buffered']
    #allocation15 [shape = 's32[1]{0}', space=sflag, size = 0x4, scoped, tag = 'scoped memory for tpu_custom_call.1']
    #allocation16 [shape = 'u8[32768]{0}', space=vmem, size = 0x8000, scoped, tag = 'input window, operand 15, single buffered']
    #allocation17 [shape = 'u8[40960]{0}', space=vmem, size = 0xa000, scoped, tag = 'output window, operand 0, single buffered']
    %22 = vsyncpa [#allocation3], 0
    %23 = vsyncpa [#allocation6], 0
    %24 = vsyncpa [#allocation9], 0
    %25 = vsyncpa [#allocation12], 0
    %26 = vsyncpa [#allocation15], 0
    %27 = vsyncpa [#allocation4], 0
    // Predicated region
    $region2: #{tpu_custom_call.1} parent=1 // pred_check
      _
    $region3: #{tpu_custom_call.1} parent=1 // pred_check_branch
      %29 = sbr.rel (0) target = $region5
    $region4: #{tpu_custom_call.1} parent=1 // pred_region
      %31 = vsyncadd [#allocation3], 0
      %s32 = sshll.u32 %s0, 4
      %s33 = int_to_ptr.hbm [resolvable:$true] %s32
      %s34 = sshll.u32 [#allocation2], 4
      %s35 = int_to_ptr.vmem [resolvable:$true] %s34
      %40 = dma.hbm_to_vmem [thread:$0]  %s33, 128, %s35, [#allocation3], 64, 64, 4
    $region5: #{tpu_custom_call.1} parent=1 // pred_fallthru
      _
    // Predicated region
    $region6: #{tpu_custom_call.1} parent=1 // pred_check
      _
    $region7: #{tpu_custom_call.1} parent=1 // pred_check_branch
      %42 = sbr.rel (0) target = $region9
    $region8: #{tpu_custom_call.1} parent=1 // pred_region
      %44 = vsyncadd [#allocation6], 0
      %s45 = sshll.u32 %s1, 4
      %s46 = int_to_ptr.hbm [resolvable:$true] %s45
      %s47 = sshll.u32 [#allocation5], 4
      %s48 = int_to_ptr.vmem [resolvable:$true] %s47
      %53 = dma.hbm_to_vmem [thread:$0]  %s46, 1024, %s48, [#allocation6], 64, 64, 4
    $region9: #{tpu_custom_call.1} parent=1 // pred_fallthru
      _
    // Predicated region
    $region10: #{tpu_custom_call.1} parent=1 // pred_check
      _
    $region11: #{tpu_custom_call.1} parent=1 // pred_check_branch
      %55 = sbr.rel (0) target = $region13
    $region12: #{tpu_custom_call.1} parent=1 // pred_region
      _
    $region13: #{tpu_custom_call.1} parent=1 // pred_fallthru
      _
    // Predicated region
    $region14: #{tpu_custom_call.1} parent=1 // pred_check
      _
    $region15: #{tpu_custom_call.1} parent=1 // pred_check_branch
      %57 = sbr.rel (0) target = $region17
    $region16: #{tpu_custom_call.1} parent=1 // pred_region
      %59 = vsyncadd [#allocation6], 0
      %s60 = sshll.u32 %s3, 4
      %s61 = int_to_ptr.hbm [resolvable:$true] %s60
      %s62 = sshll.u32 [#allocation7], 4
      %s63 = int_to_ptr.vmem [resolvable:$true] %s62
      %68 = dma.hbm_to_vmem [thread:$0]  %s61, 1024, %s63, [#allocation6], 64, 64, 4
    $region17: #{tpu_custom_call.1} parent=1 // pred_fallthru
      _
    // Predicated region
    $region18: #{tpu_custom_call.1} parent=1 // pred_check
      _
    $region19: #{tpu_custom_call.1} parent=1 // pred_check_branch
      %70 = sbr.rel (0) target = $region21
    $region20: #{tpu_custom_call.1} parent=1 // pred_region
      _
    $region21: #{tpu_custom_call.1} parent=1 // pred_fallthru
      _
    // Predicated region
    $region22: #{tpu_custom_call.1} parent=1 // pred_check
      _
    $region23: #{tpu_custom_call.1} parent=1 // pred_check_branch
      %72 = sbr.rel (0) target = $region25
    $region24: #{tpu_custom_call.1} parent=1 // pred_region
      %74 = vsyncadd [#allocation9], 0
      %s75 = sshll.u32 %s5, 4
      %s76 = int_to_ptr.hbm [resolvable:$true] %s75
      %s77 = sshll.u32 [#allocation8], 4
      %s78 = int_to_ptr.vmem [resolvable:$true] %s77
      %83 = dma.hbm_to_vmem [thread:$0]  %s76, 1024, %s78, [#allocation9], 64, 64, 4
    $region25: #{tpu_custom_call.1} parent=1 // pred_fallthru
      _
    // Predicated region
    $region26: #{tpu_custom_call.1} parent=1 // pred_check
      _
    $region27: #{tpu_custom_call.1} parent=1 // pred_check_branch
      %85 = sbr.rel (0) target = $region29
    $region28: #{tpu_custom_call.1} parent=1 // pred_region
      _
    $region29: #{tpu_custom_call.1} parent=1 // pred_fallthru
      _
    // Predicated region
    $region30: #{tpu_custom_call.1} parent=1 // pred_check
      _
    $region31: #{tpu_custom_call.1} parent=1 // pred_check_branch
      %87 = sbr.rel (0) target = $region33
    $region32: #{tpu_custom_call.1} parent=1 // pred_region
      %89 = vsyncadd [#allocation9], 0
      %s90 = sshll.u32 %s7, 4
      %s91 = int_to_ptr.hbm [resolvable:$true] %s90
      %s92 = sshll.u32 [#allocation10], 4
      %s93 = int_to_ptr.vmem [resolvable:$true] %s92
      %98 = dma.hbm_to_vmem [thread:$0]  %s91, 1024, %s93, [#allocation9], 64, 64, 4
    $region33: #{tpu_custom_call.1} parent=1 // pred_fallthru
      _
    // Predicated region
    $region34: #{tpu_custom_call.1} parent=1 // pred_check
      _
    $region35: #{tpu_custom_call.1} parent=1 // pred_check_branch
      %100 = sbr.rel (0) target = $region37
    $region36: #{tpu_custom_call.1} parent=1 // pred_region
      _
    $region37: #{tpu_custom_call.1} parent=1 // pred_fallthru
      _
    // Predicated region
    $region38: #{tpu_custom_call.1} parent=1 // pred_check
      _
    $region39: #{tpu_custom_call.1} parent=1 // pred_check_branch
      %102 = sbr.rel (0) target = $region41
    $region40: #{tpu_custom_call.1} parent=1 // pred_region
      %104 = vsyncadd [#allocation12], 0
      %s105 = sshll.u32 %s9, 4
      %s106 = int_to_ptr.hbm [resolvable:$true] %s105
      %s107 = sshll.u32 [#allocation11], 4
      %s108 = int_to_ptr.vmem [resolvable:$true] %s107
      %113 = dma.hbm_to_vmem [thread:$0]  %s106, 1024, %s108, [#allocation12], 64, 64, 4
    $region41: #{tpu_custom_call.1} parent=1 // pred_fallthru
      _
    // Predicated region
    $region42: #{tpu_custom_call.1} parent=1 // pred_check
      _
    $region43: #{tpu_custom_call.1} parent=1 // pred_check_branch
      %115 = sbr.rel (0) target = $region45
    $region44: #{tpu_custom_call.1} parent=1 // pred_region
      _
    $region45: #{tpu_custom_call.1} parent=1 // pred_fallthru
      _
    // Predicated region
    $region46: #{tpu_custom_call.1} parent=1 // pred_check
      _
    $region47: #{tpu_custom_call.1} parent=1 // pred_check_branch
      %117 = sbr.rel (0) target = $region49
    $region48: #{tpu_custom_call.1} parent=1 // pred_region
      %119 = vsyncadd [#allocation12], 0
      %s120 = sshll.u32 %s11, 4
      %s121 = int_to_ptr.hbm [resolvable:$true] %s120
      %s122 = sshll.u32 [#allocation13], 4
      %s123 = int_to_ptr.vmem [resolvable:$true] %s122
      %128 = dma.hbm_to_vmem [thread:$0]  %s121, 1024, %s123, [#allocation12], 64, 64, 4
    $region49: #{tpu_custom_call.1} parent=1 // pred_fallthru
      _
    // Predicated region
    $region50: #{tpu_custom_call.1} parent=1 // pred_check
      _
    $region51: #{tpu_custom_call.1} parent=1 // pred_check_branch
      %130 = sbr.rel (0) target = $region53
    $region52: #{tpu_custom_call.1} parent=1 // pred_region
      _
    $region53: #{tpu_custom_call.1} parent=1 // pred_fallthru
      _
    // Predicated region
    $region54: #{tpu_custom_call.1} parent=1 // pred_check
      _
    $region55: #{tpu_custom_call.1} parent=1 // pred_check_branch
      %132 = sbr.rel (0) target = $region57
    $region56: #{tpu_custom_call.1} parent=1 // pred_region
      %134 = vsyncadd [#allocation15], 0
      %s135 = sshll.u32 %s13, 4
      %s136 = int_to_ptr.hbm [resolvable:$true] %s135
      %s137 = sshll.u32 [#allocation14], 4
      %s138 = int_to_ptr.vmem [resolvable:$true] %s137
      %143 = dma.hbm_to_vmem [thread:$0]  %s136, 1024, %s138, [#allocation15], 64, 64, 4
    $region57: #{tpu_custom_call.1} parent=1 // pred_fallthru
      _
    // Predicated region
    $region58: #{tpu_custom_call.1} parent=1 // pred_check
      _
    $region59: #{tpu_custom_call.1} parent=1 // pred_check_branch
      %145 = sbr.rel (0) target = $region61
    $region60: #{tpu_custom_call.1} parent=1 // pred_region
      _
    $region61: #{tpu_custom_call.1} parent=1 // pred_fallthru
      _
    // Predicated region
    $region62: #{tpu_custom_call.1} parent=1 // pred_check
      _
    $region63: #{tpu_custom_call.1} parent=1 // pred_check_branch
      %147 = sbr.rel (0) target = $region65
    $region64: #{tpu_custom_call.1} parent=1 // pred_region
      %149 = vsyncadd [#allocation15], 0
      %s150 = sshll.u32 %s15, 4
      %s151 = int_to_ptr.hbm [resolvable:$true] %s150
      %s152 = sshll.u32 [#allocation16], 4
      %s153 = int_to_ptr.vmem [resolvable:$true] %s152
      %158 = dma.hbm_to_vmem [thread:$0]  %s151, 1024, %s153, [#allocation15], 64, 64, 4
    $region65: #{tpu_custom_call.1} parent=1 // pred_fallthru
      _
    // Predicated region
    $region66: #{tpu_custom_call.1} parent=1 // pred_check
      _
    $region67: #{tpu_custom_call.1} parent=1 // pred_check_branch
      %160 = sbr.rel (0) target = $region69
    $region68: #{tpu_custom_call.1} parent=1 // pred_region
      _
    $region69: #{tpu_custom_call.1} parent=1 // pred_fallthru
      _
    // Predicated region
    $region70: #{tpu_custom_call.1} parent=1 // pred_check
      _
    $region71: #{tpu_custom_call.1} parent=1 // pred_check_branch
      %162 = sbr.rel (0) target = $region73
    $region72: #{tpu_custom_call.1} parent=1 // pred_region
      %164 = dma.done [#allocation3], 128
    $region73: #{tpu_custom_call.1} parent=1 // pred_fallthru
      _
    // Predicated region
    $region74: #{tpu_custom_call.1} parent=1 // pred_check
      _
    $region75: #{tpu_custom_call.1} parent=1 // pred_check_branch
      %166 = sbr.rel (0) target = $region77
    $region76: #{tpu_custom_call.1} parent=1 // pred_region
      %168 = dma.done [#allocation6], 1024
    $region77: #{tpu_custom_call.1} parent=1 // pred_fallthru
      _
    // Predicated region
    $region78: #{tpu_custom_call.1} parent=1 // pred_check
      _
    $region79: #{tpu_custom_call.1} parent=1 // pred_check_branch
      %170 = sbr.rel (0) target = $region81
    $region80: #{tpu_custom_call.1} parent=1 // pred_region
      %172 = dma.done [#allocation6], 1024
    $region81: #{tpu_custom_call.1} parent=1 // pred_fallthru
      _
    // Predicated region
    $region82: #{tpu_custom_call.1} parent=1 // pred_check
      _
    $region83: #{tpu_custom_call.1} parent=1 // pred_check_branch
      %174 = sbr.rel (0) target = $region85
    $region84: #{tpu_custom_call.1} parent=1 // pred_region
      %176 = dma.done [#allocation9], 1024
    $region85: #{tpu_custom_call.1} parent=1 // pred_fallthru
      _
    // Predicated region
    $region86: #{tpu_custom_call.1} parent=1 // pred_check
      _
    $region87: #{tpu_custom_call.1} parent=1 // pred_check_branch
      %178 = sbr.rel (0) target = $region89
    $region88: #{tpu_custom_call.1} parent=1 // pred_region
      %180 = dma.done [#allocation9], 1024
    $region89: #{tpu_custom_call.1} parent=1 // pred_fallthru
      _
    // Predicated region
    $region90: #{tpu_custom_call.1} parent=1 // pred_check
      _
    $region91: #{tpu_custom_call.1} parent=1 // pred_check_branch
      %182 = sbr.rel (0) target = $region93
    $region92: #{tpu_custom_call.1} parent=1 // pred_region
      %184 = dma.done [#allocation12], 1024
    $region93: #{tpu_custom_call.1} parent=1 // pred_fallthru
      _
    // Predicated region
    $region94: #{tpu_custom_call.1} parent=1 // pred_check
      _
    $region95: #{tpu_custom_call.1} parent=1 // pred_check_branch
      %186 = sbr.rel (0) target = $region97
    $region96: #{tpu_custom_call.1} parent=1 // pred_region
      %188 = dma.done [#allocation12], 1024
    $region97: #{tpu_custom_call.1} parent=1 // pred_fallthru
      _
    // Predicated region
    $region98: #{tpu_custom_call.1} parent=1 // pred_check
      _
    $region99: #{tpu_custom_call.1} parent=1 // pred_check_branch
      %190 = sbr.rel (0) target = $region101
    $region100: #{tpu_custom_call.1} parent=1 // pred_region
      %192 = dma.done [#allocation15], 1024
    $region101: #{tpu_custom_call.1} parent=1 // pred_fallthru
      _
    // Predicated region
    $region102: #{tpu_custom_call.1} parent=1 // pred_check
      _
    $region103: #{tpu_custom_call.1} parent=1 // pred_check_branch
      %194 = sbr.rel (0) target = $region105
    $region104: #{tpu_custom_call.1} parent=1 // pred_region
      %196 = dma.done [#allocation15], 1024
    $region105: #{tpu_custom_call.1} parent=1 // pred_fallthru
      _
    %v197 = vld [vmem:[#allocation2] sm:$0xf]
    %v198 = vld [vmem:[#allocation2 + $0x4] sm:$0xf]
    %v199 = vld [vmem:[#allocation5] sm:$0xf]
    %v200 = vld [vmem:[#allocation5 + $0x4] sm:$0xf]
    %v201 = vld [vmem:[#allocation5 + $0x8] sm:$0xf]
    %v202 = vld [vmem:[#allocation5 + $0xc] sm:$0xf]
    %v203 = vld [vmem:[#allocation5 + $0x10] sm:$0xf]
    %v204 = vld [vmem:[#allocation5 + $0x14] sm:$0xf]
    %v205 = vld [vmem:[#allocation5 + $0x18] sm:$0xf]
    %v206 = vld [vmem:[#allocation5 + $0x1c] sm:$0xf]
    %v207 = vld [vmem:[#allocation5 + $0x20] sm:$0xf]
    %v208 = vld [vmem:[#allocation5 + $0x24] sm:$0xf]
    %v209 = vld [vmem:[#allocation5 + $0x28] sm:$0xf]
    %v210 = vld [vmem:[#allocation5 + $0x2c] sm:$0xf]
    %v211 = vld [vmem:[#allocation5 + $0x30] sm:$0xf]
    %v212 = vld [vmem:[#allocation5 + $0x34] sm:$0xf]
    %v213 = vld [vmem:[#allocation5 + $0x38] sm:$0xf]
    %v214 = vld [vmem:[#allocation5 + $0x3c] sm:$0xf]
    %v215 = vld [vmem:[%s2] sm:$0x1]
    %v217 = vperm.slane %v215, 0
    %v221 = vunpack.c.l.b16 %v197
    %v222 = vunpack.c.l.b16 %v198
    %v223 = vpack.c.b16 %v222, %v221
    %v241 = vunpack.c.l.b16 %v199
    %v242 = vunpack.c.l.b16 %v200
    %v243 = vunpack.c.l.b16 %v201
    %v244 = vunpack.c.l.b16 %v202
    %v245 = vunpack.c.l.b16 %v203
    %v246 = vunpack.c.l.b16 %v204
    %v247 = vunpack.c.l.b16 %v205
    %v248 = vunpack.c.l.b16 %v206
    %v249 = vunpack.c.l.b16 %v207
    %v250 = vunpack.c.l.b16 %v208
    %v251 = vunpack.c.l.b16 %v209
    %v252 = vunpack.c.l.b16 %v210
    %v253 = vunpack.c.l.b16 %v211
    %v254 = vunpack.c.l.b16 %v212
    %v255 = vunpack.c.l.b16 %v213
    %v256 = vunpack.c.l.b16 %v214
    %v257 = vpack.c.b16 %v242, %v241
    %v258 = vpack.c.b16 %v244, %v243
    %v259 = vpack.c.b16 %v246, %v245
    %v260 = vpack.c.b16 %v248, %v247
    %v261 = vpack.c.b16 %v250, %v249
    %v262 = vpack.c.b16 %v252, %v251
    %v263 = vpack.c.b16 %v254, %v253
    %v264 = vpack.c.b16 %v256, %v255
    %273 = vmatpush.bf16.msra.mxu0 %v264
    %274 = vmatpush.bf16.msra.mxu0 %v263
    %275 = vmatpush.bf16.msra.mxu0 %v262
    %276 = vmatpush.bf16.msra.mxu0 %v261
    %277 = vmatpush.bf16.msra.mxu0 %v260
    %278 = vmatpush.bf16.msra.mxu0 %v259
    %279 = vmatpush.bf16.msra.mxu0 %v258
    %280 = vmatpush.bf16.msra.mxu0 %v257
    %281 = vmatmul.bf16.gmra.mxu0 %v223
    %v282 = vpop.f32.mrf.mxu0
    %v283 = vadd.f32 %v217, %v282
    %v284 = vpop.f32.mrf.mxu0
    %v285 = vadd.f32 %v217, %v284
    %286 = vdwg.mxu0
    %v287 = vmax.f32 %v283, 0.0
    %v288 = vmax.f32 %v285, 0.0
    %v289 = vpack.c.bf16 %v288, %v287
    %v290 = vld [vmem:[#allocation7] sm:$0xf]
    %v291 = vld [vmem:[#allocation7 + $0x4] sm:$0xf]
    %v292 = vld [vmem:[#allocation7 + $0x8] sm:$0xf]
    %v293 = vld [vmem:[#allocation7 + $0xc] sm:$0xf]
    %v294 = vld [vmem:[#allocation7 + $0x10] sm:$0xf]
    %v295 = vld [vmem:[#allocation7 + $0x14] sm:$0xf]
    %v296 = vld [vmem:[#allocation7 + $0x18] sm:$0xf]
    %v297 = vld [vmem:[#allocation7 + $0x1c] sm:$0xf]
    %v298 = vld [vmem:[#allocation7 + $0x20] sm:$0xf]
    %v299 = vld [vmem:[#allocation7 + $0x24] sm:$0xf]
    %v300 = vld [vmem:[#allocation7 + $0x28] sm:$0xf]
    %v301 = vld [vmem:[#allocation7 + $0x2c] sm:$0xf]
    %v302 = vld [vmem:[#allocation7 + $0x30] sm:$0xf]
    %v303 = vld [vmem:[#allocation7 + $0x34] sm:$0xf]
    %v304 = vld [vmem:[#allocation7 + $0x38] sm:$0xf]
    %v305 = vld [vmem:[#allocation7 + $0x3c] sm:$0xf]
    %v306 = vld [vmem:[%s4] sm:$0x1]
    %v308 = vperm.slane %v306, 0
    %v326 = vunpack.c.l.b16 %v290
    %v327 = vunpack.c.l.b16 %v291
    %v328 = vunpack.c.l.b16 %v292
    %v329 = vunpack.c.l.b16 %v293
    %v330 = vunpack.c.l.b16 %v294
    %v331 = vunpack.c.l.b16 %v295
    %v332 = vunpack.c.l.b16 %v296
    %v333 = vunpack.c.l.b16 %v297
    %v334 = vunpack.c.l.b16 %v298
    %v335 = vunpack.c.l.b16 %v299
    %v336 = vunpack.c.l.b16 %v300
    %v337 = vunpack.c.l.b16 %v301
    %v338 = vunpack.c.l.b16 %v302
    %v339 = vunpack.c.l.b16 %v303
    %v340 = vunpack.c.l.b16 %v304
    %v341 = vunpack.c.l.b16 %v305
    %v342 = vpack.c.b16 %v327, %v326
    %v343 = vpack.c.b16 %v329, %v328
    %v344 = vpack.c.b16 %v331, %v330
    %v345 = vpack.c.b16 %v333, %v332
    %v346 = vpack.c.b16 %v335, %v334
    %v347 = vpack.c.b16 %v337, %v336
    %v348 = vpack.c.b16 %v339, %v338
    %v349 = vpack.c.b16 %v341, %v340
    %358 = vmatpush.bf16.msra.mxu0 %v349
    %359 = vmatpush.bf16.msra.mxu0 %v348
    %360 = vmatpush.bf16.msra.mxu0 %v347
    %361 = vmatpush.bf16.msra.mxu0 %v346
    %362 = vmatpush.bf16.msra.mxu0 %v345
    %363 = vmatpush.bf16.msra.mxu0 %v344
    %364 = vmatpush.bf16.msra.mxu0 %v343
    %365 = vmatpush.bf16.msra.mxu0 %v342
    %366 = vmatmul.bf16.gmra.mxu0 %v289
    %v367 = vpop.f32.mrf.mxu0
    %v368 = vadd.f32 %v308, %v367
    %v369 = vpop.f32.mrf.mxu0
    %v370 = vadd.f32 %v308, %v369
    %371 = vdwg.mxu0
    %v372 = vmax.f32 %v368, 0.0
    %v373 = vmax.f32 %v370, 0.0
    %v374 = vpack.c.bf16 %v373, %v372
    %v375 = vld [vmem:[#allocation8] sm:$0xf]
    %v376 = vld [vmem:[#allocation8 + $0x4] sm:$0xf]
    %v377 = vld [vmem:[#allocation8 + $0x8] sm:$0xf]
    %v378 = vld [vmem:[#allocation8 + $0xc] sm:$0xf]
    %v379 = vld [vmem:[#allocation8 + $0x10] sm:$0xf]
    %v380 = vld [vmem:[#allocation8 + $0x14] sm:$0xf]
    %v381 = vld [vmem:[#allocation8 + $0x18] sm:$0xf]
    %v382 = vld [vmem:[#allocation8 + $0x1c] sm:$0xf]
    %v383 = vld [vmem:[#allocation8 + $0x20] sm:$0xf]
    %v384 = vld [vmem:[#allocation8 + $0x24] sm:$0xf]
    %v385 = vld [vmem:[#allocation8 + $0x28] sm:$0xf]
    %v386 = vld [vmem:[#allocation8 + $0x2c] sm:$0xf]
    %v387 = vld [vmem:[#allocation8 + $0x30] sm:$0xf]
    %v388 = vld [vmem:[#allocation8 + $0x34] sm:$0xf]
    %v389 = vld [vmem:[#allocation8 + $0x38] sm:$0xf]
    %v390 = vld [vmem:[#allocation8 + $0x3c] sm:$0xf]
    %v391 = vld [vmem:[%s6] sm:$0x1]
    %v393 = vperm.slane %v391, 0
    %v411 = vunpack.c.l.b16 %v375
    %v412 = vunpack.c.l.b16 %v376
    %v413 = vunpack.c.l.b16 %v377
    %v414 = vunpack.c.l.b16 %v378
    %v415 = vunpack.c.l.b16 %v379
    %v416 = vunpack.c.l.b16 %v380
    %v417 = vunpack.c.l.b16 %v381
    %v418 = vunpack.c.l.b16 %v382
    %v419 = vunpack.c.l.b16 %v383
    %v420 = vunpack.c.l.b16 %v384
    %v421 = vunpack.c.l.b16 %v385
    %v422 = vunpack.c.l.b16 %v386
    %v423 = vunpack.c.l.b16 %v387
    %v424 = vunpack.c.l.b16 %v388
    %v425 = vunpack.c.l.b16 %v389
    %v426 = vunpack.c.l.b16 %v390
    %v427 = vpack.c.b16 %v412, %v411
    %v428 = vpack.c.b16 %v414, %v413
    %v429 = vpack.c.b16 %v416, %v415
    %v430 = vpack.c.b16 %v418, %v417
    %v431 = vpack.c.b16 %v420, %v419
    %v432 = vpack.c.b16 %v422, %v421
    %v433 = vpack.c.b16 %v424, %v423
    %v434 = vpack.c.b16 %v426, %v425
    %443 = vmatpush.bf16.msra.mxu0 %v434
    %444 = vmatpush.bf16.msra.mxu0 %v433
    %445 = vmatpush.bf16.msra.mxu0 %v432
    %446 = vmatpush.bf16.msra.mxu0 %v431
    %447 = vmatpush.bf16.msra.mxu0 %v430
    %448 = vmatpush.bf16.msra.mxu0 %v429
    %449 = vmatpush.bf16.msra.mxu0 %v428
    %450 = vmatpush.bf16.msra.mxu0 %v427
    %451 = vmatmul.bf16.gmra.mxu0 %v374
    %v452 = vpop.f32.mrf.mxu0
    %v453 = vadd.f32 %v393, %v452
    %v454 = vpop.f32.mrf.mxu0
    %v455 = vadd.f32 %v393, %v454
    %456 = vdwg.mxu0
    %v457 = vmax.f32 %v453, 0.0
    %v458 = vmax.f32 %v455, 0.0
    %v459 = vpack.c.bf16 %v458, %v457
    %v460 = vld [vmem:[#allocation10] sm:$0xf]
    %v461 = vld [vmem:[#allocation10 + $0x4] sm:$0xf]
    %v462 = vld [vmem:[#allocation10 + $0x8] sm:$0xf]
    %v463 = vld [vmem:[#allocation10 + $0xc] sm:$0xf]
    %v464 = vld [vmem:[#allocation10 + $0x10] sm:$0xf]
    %v465 = vld [vmem:[#allocation10 + $0x14] sm:$0xf]
    %v466 = vld [vmem:[#allocation10 + $0x18] sm:$0xf]
    %v467 = vld [vmem:[#allocation10 + $0x1c] sm:$0xf]
    %v468 = vld [vmem:[#allocation10 + $0x20] sm:$0xf]
    %v469 = vld [vmem:[#allocation10 + $0x24] sm:$0xf]
    %v470 = vld [vmem:[#allocation10 + $0x28] sm:$0xf]
    %v471 = vld [vmem:[#allocation10 + $0x2c] sm:$0xf]
    %v472 = vld [vmem:[#allocation10 + $0x30] sm:$0xf]
    %v473 = vld [vmem:[#allocation10 + $0x34] sm:$0xf]
    %v474 = vld [vmem:[#allocation10 + $0x38] sm:$0xf]
    %v475 = vld [vmem:[#allocation10 + $0x3c] sm:$0xf]
    %v476 = vld [vmem:[%s8] sm:$0x1]
    %v478 = vperm.slane %v476, 0
    %v496 = vunpack.c.l.b16 %v460
    %v497 = vunpack.c.l.b16 %v461
    %v498 = vunpack.c.l.b16 %v462
    %v499 = vunpack.c.l.b16 %v463
    %v500 = vunpack.c.l.b16 %v464
    %v501 = vunpack.c.l.b16 %v465
    %v502 = vunpack.c.l.b16 %v466
    %v503 = vunpack.c.l.b16 %v467
    %v504 = vunpack.c.l.b16 %v468
    %v505 = vunpack.c.l.b16 %v469
    %v506 = vunpack.c.l.b16 %v470
    %v507 = vunpack.c.l.b16 %v471
    %v508 = vunpack.c.l.b16 %v472
    %v509 = vunpack.c.l.b16 %v473
    %v510 = vunpack.c.l.b16 %v474
    %v511 = vunpack.c.l.b16 %v475
    %v512 = vpack.c.b16 %v497, %v496
    %v513 = vpack.c.b16 %v499, %v498
    %v514 = vpack.c.b16 %v501, %v500
    %v515 = vpack.c.b16 %v503, %v502
    %v516 = vpack.c.b16 %v505, %v504
    %v517 = vpack.c.b16 %v507, %v506
    %v518 = vpack.c.b16 %v509, %v508
    %v519 = vpack.c.b16 %v511, %v510
    %528 = vmatpush.bf16.msra.mxu0 %v519
    %529 = vmatpush.bf16.msra.mxu0 %v518
    %530 = vmatpush.bf16.msra.mxu0 %v517
    %531 = vmatpush.bf16.msra.mxu0 %v516
    %532 = vmatpush.bf16.msra.mxu0 %v515
    %533 = vmatpush.bf16.msra.mxu0 %v514
    %534 = vmatpush.bf16.msra.mxu0 %v513
    %535 = vmatpush.bf16.msra.mxu0 %v512
    %536 = vmatmul.bf16.gmra.mxu0 %v459
    %v537 = vpop.f32.mrf.mxu0
    %v538 = vadd.f32 %v478, %v537
    %v539 = vpop.f32.mrf.mxu0
    %v540 = vadd.f32 %v478, %v539
    %541 = vdwg.mxu0
    %v542 = vpack.c.bf16 %v540, %v538
    %v543 = vld [vmem:[#allocation11] sm:$0xf]
    %v544 = vld [vmem:[#allocation11 + $0x4] sm:$0xf]
    %v545 = vld [vmem:[#allocation11 + $0x8] sm:$0xf]
    %v546 = vld [vmem:[#allocation11 + $0xc] sm:$0xf]
    %v547 = vld [vmem:[#allocation11 + $0x10] sm:$0xf]
    %v548 = vld [vmem:[#allocation11 + $0x14] sm:$0xf]
    %v549 = vld [vmem:[#allocation11 + $0x18] sm:$0xf]
    %v550 = vld [vmem:[#allocation11 + $0x1c] sm:$0xf]
    %v551 = vld [vmem:[#allocation11 + $0x20] sm:$0xf]
    %v552 = vld [vmem:[#allocation11 + $0x24] sm:$0xf]
    %v553 = vld [vmem:[#allocation11 + $0x28] sm:$0xf]
    %v554 = vld [vmem:[#allocation11 + $0x2c] sm:$0xf]
    %v555 = vld [vmem:[#allocation11 + $0x30] sm:$0xf]
    %v556 = vld [vmem:[#allocation11 + $0x34] sm:$0xf]
    %v557 = vld [vmem:[#allocation11 + $0x38] sm:$0xf]
    %v558 = vld [vmem:[#allocation11 + $0x3c] sm:$0xf]
    %v559 = vld [vmem:[%s10] sm:$0x1]
    %v561 = vperm.slane %v559, 0
    %v579 = vunpack.c.l.b16 %v543
    %v580 = vunpack.c.l.b16 %v544
    %v581 = vunpack.c.l.b16 %v545
    %v582 = vunpack.c.l.b16 %v546
    %v583 = vunpack.c.l.b16 %v547
    %v584 = vunpack.c.l.b16 %v548
    %v585 = vunpack.c.l.b16 %v549
    %v586 = vunpack.c.l.b16 %v550
    %v587 = vunpack.c.l.b16 %v551
    %v588 = vunpack.c.l.b16 %v552
    %v589 = vunpack.c.l.b16 %v553
    %v590 = vunpack.c.l.b16 %v554
    %v591 = vunpack.c.l.b16 %v555
    %v592 = vunpack.c.l.b16 %v556
    %v593 = vunpack.c.l.b16 %v557
    %v594 = vunpack.c.l.b16 %v558
    %v595 = vpack.c.b16 %v580, %v579
    %v596 = vpack.c.b16 %v582, %v581
    %v597 = vpack.c.b16 %v584, %v583
    %v598 = vpack.c.b16 %v586, %v585
    %v599 = vpack.c.b16 %v588, %v587
    %v600 = vpack.c.b16 %v590, %v589
    %v601 = vpack.c.b16 %v592, %v591
    %v602 = vpack.c.b16 %v594, %v593
    %611 = vmatpush.bf16.msra.mxu0 %v602
    %612 = vmatpush.bf16.msra.mxu0 %v601
    %613 = vmatpush.bf16.msra.mxu0 %v600
    %614 = vmatpush.bf16.msra.mxu0 %v599
    %615 = vmatpush.bf16.msra.mxu0 %v598
    %616 = vmatpush.bf16.msra.mxu0 %v597
    %617 = vmatpush.bf16.msra.mxu0 %v596
    %618 = vmatpush.bf16.msra.mxu0 %v595
    %619 = vmatmul.bf16.gmra.mxu0 %v542
    %v620 = vpop.f32.mrf.mxu0
    %v621 = vadd.f32 %v561, %v620
    %v622 = vpop.f32.mrf.mxu0
    %v623 = vadd.f32 %v561, %v622
    %624 = vdwg.mxu0
    %v625 = vmax.f32 %v621, 0.0
    %v626 = vmax.f32 %v623, 0.0
    %v627 = vpack.c.bf16 %v626, %v625
    %v628 = vld [vmem:[#allocation13] sm:$0xf]
    %v629 = vld [vmem:[#allocation13 + $0x4] sm:$0xf]
    %v630 = vld [vmem:[#allocation13 + $0x8] sm:$0xf]
    %v631 = vld [vmem:[#allocation13 + $0xc] sm:$0xf]
    %v632 = vld [vmem:[#allocation13 + $0x10] sm:$0xf]
    %v633 = vld [vmem:[#allocation13 + $0x14] sm:$0xf]
    %v634 = vld [vmem:[#allocation13 + $0x18] sm:$0xf]
    %v635 = vld [vmem:[#allocation13 + $0x1c] sm:$0xf]
    %v636 = vld [vmem:[#allocation13 + $0x20] sm:$0xf]
    %v637 = vld [vmem:[#allocation13 + $0x24] sm:$0xf]
    %v638 = vld [vmem:[#allocation13 + $0x28] sm:$0xf]
    %v639 = vld [vmem:[#allocation13 + $0x2c] sm:$0xf]
    %v640 = vld [vmem:[#allocation13 + $0x30] sm:$0xf]
    %v641 = vld [vmem:[#allocation13 + $0x34] sm:$0xf]
    %v642 = vld [vmem:[#allocation13 + $0x38] sm:$0xf]
    %v643 = vld [vmem:[#allocation13 + $0x3c] sm:$0xf]
    %v644 = vld [vmem:[%s12] sm:$0x1]
    %v646 = vperm.slane %v644, 0
    %v664 = vunpack.c.l.b16 %v628
    %v665 = vunpack.c.l.b16 %v629
    %v666 = vunpack.c.l.b16 %v630
    %v667 = vunpack.c.l.b16 %v631
    %v668 = vunpack.c.l.b16 %v632
    %v669 = vunpack.c.l.b16 %v633
    %v670 = vunpack.c.l.b16 %v634
    %v671 = vunpack.c.l.b16 %v635
    %v672 = vunpack.c.l.b16 %v636
    %v673 = vunpack.c.l.b16 %v637
    %v674 = vunpack.c.l.b16 %v638
    %v675 = vunpack.c.l.b16 %v639
    %v676 = vunpack.c.l.b16 %v640
    %v677 = vunpack.c.l.b16 %v641
    %v678 = vunpack.c.l.b16 %v642
    %v679 = vunpack.c.l.b16 %v643
    %v680 = vpack.c.b16 %v665, %v664
    %v681 = vpack.c.b16 %v667, %v666
    %v682 = vpack.c.b16 %v669, %v668
    %v683 = vpack.c.b16 %v671, %v670
    %v684 = vpack.c.b16 %v673, %v672
    %v685 = vpack.c.b16 %v675, %v674
    %v686 = vpack.c.b16 %v677, %v676
    %v687 = vpack.c.b16 %v679, %v678
    %696 = vmatpush.bf16.msra.mxu0 %v687
    %697 = vmatpush.bf16.msra.mxu0 %v686
    %698 = vmatpush.bf16.msra.mxu0 %v685
    %699 = vmatpush.bf16.msra.mxu0 %v684
    %700 = vmatpush.bf16.msra.mxu0 %v683
    %701 = vmatpush.bf16.msra.mxu0 %v682
    %702 = vmatpush.bf16.msra.mxu0 %v681
    %703 = vmatpush.bf16.msra.mxu0 %v680
    %704 = vmatmul.bf16.gmra.mxu0 %v627
    %v705 = vpop.f32.mrf.mxu0
    %v706 = vadd.f32 %v646, %v705
    %v707 = vpop.f32.mrf.mxu0
    %v708 = vadd.f32 %v646, %v707
    %709 = vdwg.mxu0
    %v710 = vmax.f32 %v706, 0.0
    %v711 = vmax.f32 %v708, 0.0
    %v712 = vpack.c.bf16 %v711, %v710
    %v713 = vld [vmem:[#allocation14] sm:$0xf]
    %v714 = vld [vmem:[#allocation14 + $0x4] sm:$0xf]
    %v715 = vld [vmem:[#allocation14 + $0x8] sm:$0xf]
    %v716 = vld [vmem:[#allocation14 + $0xc] sm:$0xf]
    %v717 = vld [vmem:[#allocation14 + $0x10] sm:$0xf]
    %v718 = vld [vmem:[#allocation14 + $0x14] sm:$0xf]
    %v719 = vld [vmem:[#allocation14 + $0x18] sm:$0xf]
    %v720 = vld [vmem:[#allocation14 + $0x1c] sm:$0xf]
    %v721 = vld [vmem:[#allocation14 + $0x20] sm:$0xf]
    %v722 = vld [vmem:[#allocation14 + $0x24] sm:$0xf]
    %v723 = vld [vmem:[#allocation14 + $0x28] sm:$0xf]
    %v724 = vld [vmem:[#allocation14 + $0x2c] sm:$0xf]
    %v725 = vld [vmem:[#allocation14 + $0x30] sm:$0xf]
    %v726 = vld [vmem:[#allocation14 + $0x34] sm:$0xf]
    %v727 = vld [vmem:[#allocation14 + $0x38] sm:$0xf]
    %v728 = vld [vmem:[#allocation14 + $0x3c] sm:$0xf]
    %v729 = vld [vmem:[%s14] sm:$0x1]
    %v731 = vperm.slane %v729, 0
    %v749 = vunpack.c.l.b16 %v713
    %v750 = vunpack.c.l.b16 %v714
    %v751 = vunpack.c.l.b16 %v715
    %v752 = vunpack.c.l.b16 %v716
    %v753 = vunpack.c.l.b16 %v717
    %v754 = vunpack.c.l.b16 %v718
    %v755 = vunpack.c.l.b16 %v719
    %v756 = vunpack.c.l.b16 %v720
    %v757 = vunpack.c.l.b16 %v721
    %v758 = vunpack.c.l.b16 %v722
    %v759 = vunpack.c.l.b16 %v723
    %v760 = vunpack.c.l.b16 %v724
    %v761 = vunpack.c.l.b16 %v725
    %v762 = vunpack.c.l.b16 %v726
    %v763 = vunpack.c.l.b16 %v727
    %v764 = vunpack.c.l.b16 %v728
    %v765 = vpack.c.b16 %v750, %v749
    %v766 = vpack.c.b16 %v752, %v751
    %v767 = vpack.c.b16 %v754, %v753
    %v768 = vpack.c.b16 %v756, %v755
    %v769 = vpack.c.b16 %v758, %v757
    %v770 = vpack.c.b16 %v760, %v759
    %v771 = vpack.c.b16 %v762, %v761
    %v772 = vpack.c.b16 %v764, %v763
    %781 = vmatpush.bf16.msra.mxu0 %v772
    %782 = vmatpush.bf16.msra.mxu0 %v771
    %783 = vmatpush.bf16.msra.mxu0 %v770
    %784 = vmatpush.bf16.msra.mxu0 %v769
    %785 = vmatpush.bf16.msra.mxu0 %v768
    %786 = vmatpush.bf16.msra.mxu0 %v767
    %787 = vmatpush.bf16.msra.mxu0 %v766
    %788 = vmatpush.bf16.msra.mxu0 %v765
    %789 = vmatmul.bf16.gmra.mxu0 %v712
    %v790 = vpop.f32.mrf.mxu0
    %v791 = vadd.f32 %v731, %v790
    %v792 = vpop.f32.mrf.mxu0
    %v793 = vadd.f32 %v731, %v792
    %794 = vdwg.mxu0
    %v795 = vmax.f32 %v791, 0.0
    %v796 = vmax.f32 %v793, 0.0
    %v797 = vpack.c.bf16 %v796, %v795
    %v798 = vld [vmem:[#allocation16] sm:$0xf]
    %v799 = vld [vmem:[#allocation16 + $0x4] sm:$0xf]
    %v800 = vld [vmem:[#allocation16 + $0x8] sm:$0xf]
    %v801 = vld [vmem:[#allocation16 + $0xc] sm:$0xf]
    %v802 = vld [vmem:[#allocation16 + $0x10] sm:$0xf]
    %v803 = vld [vmem:[#allocation16 + $0x14] sm:$0xf]
    %v804 = vld [vmem:[#allocation16 + $0x18] sm:$0xf]
    %v805 = vld [vmem:[#allocation16 + $0x1c] sm:$0xf]
    %v806 = vld [vmem:[#allocation16 + $0x20] sm:$0xf]
    %v807 = vld [vmem:[#allocation16 + $0x24] sm:$0xf]
    %v808 = vld [vmem:[#allocation16 + $0x28] sm:$0xf]
    %v809 = vld [vmem:[#allocation16 + $0x2c] sm:$0xf]
    %v810 = vld [vmem:[#allocation16 + $0x30] sm:$0xf]
    %v811 = vld [vmem:[#allocation16 + $0x34] sm:$0xf]
    %v812 = vld [vmem:[#allocation16 + $0x38] sm:$0xf]
    %v813 = vld [vmem:[#allocation16 + $0x3c] sm:$0xf]
    %v814 = vld [vmem:[%s16] sm:$0x1]
    %v816 = vperm.slane %v814, 0
    %v834 = vunpack.c.l.b16 %v798
    %v835 = vunpack.c.l.b16 %v799
    %v836 = vunpack.c.l.b16 %v800
    %v837 = vunpack.c.l.b16 %v801
    %v838 = vunpack.c.l.b16 %v802
    %v839 = vunpack.c.l.b16 %v803
    %v840 = vunpack.c.l.b16 %v804
    %v841 = vunpack.c.l.b16 %v805
    %v842 = vunpack.c.l.b16 %v806
    %v843 = vunpack.c.l.b16 %v807
    %v844 = vunpack.c.l.b16 %v808
    %v845 = vunpack.c.l.b16 %v809
    %v846 = vunpack.c.l.b16 %v810
    %v847 = vunpack.c.l.b16 %v811
    %v848 = vunpack.c.l.b16 %v812
    %v849 = vunpack.c.l.b16 %v813
    %v850 = vpack.c.b16 %v835, %v834
    %v851 = vpack.c.b16 %v837, %v836
    %v852 = vpack.c.b16 %v839, %v838
    %v853 = vpack.c.b16 %v841, %v840
    %v854 = vpack.c.b16 %v843, %v842
    %v855 = vpack.c.b16 %v845, %v844
    %v856 = vpack.c.b16 %v847, %v846
    %v857 = vpack.c.b16 %v849, %v848
    %866 = vmatpush.bf16.msra.mxu0 %v857
    %867 = vmatpush.bf16.msra.mxu0 %v856
    %868 = vmatpush.bf16.msra.mxu0 %v855
    %869 = vmatpush.bf16.msra.mxu0 %v854
    %870 = vmatpush.bf16.msra.mxu0 %v853
    %871 = vmatpush.bf16.msra.mxu0 %v852
    %872 = vmatpush.bf16.msra.mxu0 %v851
    %873 = vmatpush.bf16.msra.mxu0 %v850
    %874 = vmatmul.bf16.gmra.mxu0 %v797
    %v875 = vpop.f32.mrf.mxu0
    %v876 = vadd.f32 %v816, %v875
    %v877 = vpop.f32.mrf.mxu0
    %v878 = vadd.f32 %v816, %v877
    %879 = vdwg.mxu0
    %880 = vst [vmem:[#allocation17] sm:$0xff] %v876
    %881 = vst [vmem:[#allocation17 + $0x28] sm:$0xff] %v878
    %882 = vst [vmem:[#allocation17 + $0x8] sm:$0xff] %v287
    %883 = vst [vmem:[#allocation17 + $0x30] sm:$0xff] %v288
    %884 = vst [vmem:[#allocation17 + $0x10] sm:$0xff] %v372
    %885 = vst [vmem:[#allocation17 + $0x38] sm:$0xff] %v373
    %886 = vst [vmem:[#allocation17 + $0x18] sm:$0xff] %v457
    %887 = vst [vmem:[#allocation17 + $0x40] sm:$0xff] %v458
    %888 = vst [vmem:[#allocation17 + $0x20] sm:$0xff] %v538
    %889 = vst [vmem:[#allocation17 + $0x48] sm:$0xff] %v540
    // Predicated region
    $region106: #{tpu_custom_call.1} parent=1 // pred_check
      _
    $region107: #{tpu_custom_call.1} parent=1 // pred_check_branch
      %891 = sbr.rel (0) target = $region109
    $region108: #{tpu_custom_call.1} parent=1 // pred_region
      %893 = vsyncadd [#allocation4], 0
      %s894 = sshll.u32 [#allocation17], 4
      %s895 = int_to_ptr.vmem [resolvable:$true] %s894
      %s896 = sshll.u32 %s17, 4
      %s897 = int_to_ptr.hbm [resolvable:$true] %s896
      %902 = dma.vmem_to_hbm [thread:$0]  %s895, 1280, %s897, [#allocation4], 640, 640, 40
    $region109: #{tpu_custom_call.1} parent=1 // pred_fallthru
      _
    // Predicated region
    $region110: #{tpu_custom_call.1} parent=1 // pred_check
      _
    $region111: #{tpu_custom_call.1} parent=1 // pred_check_branch
      %904 = sbr.rel (0) target = $region113
    $region112: #{tpu_custom_call.1} parent=1 // pred_region
      %906 = dma.done [#allocation4], 1280
    $region113: #{tpu_custom_call.1} parent=1 // pred_fallthru
      _
    %907 = vsyncpa [#allocation3], 1
    %908 = vsyncpa [#allocation6], 1
    %909 = vsyncpa [#allocation9], 1
    %910 = vsyncpa [#allocation12], 1
    %911 = vsyncpa [#allocation15], 1
    %912 = vsyncpa [#allocation4], 1

</llo_original>
